<compile_context>
chip_gen: v7x
topology: tpu7x:2x2x1
jax: 0.10.0
libtpu: 0.0.40
codegen_flags: <defaults>
</compile_context>

<pallas_src>
import numpy as np
import jax
import jax.numpy as jnp
from jax.experimental import pallas as pl
from jax.experimental.pallas import tpu as pltpu


def _round_up(n, m):
    return ((n + m - 1) // m) * m


# --------------------------------------------------------------------------- #
# Pallas kernel: confidence BCE over all cells of all scales
# --------------------------------------------------------------------------- #
def _conf_bce_kernel(conf_ref, w_ref, out_ref, acc_obj_ref, acc_noobj_ref):
    """One (chunk_sub, 128) lane/sublane-dense tile per grid step.

    conf_ref : (chunk_sub, 128)  conf logits (pads = 0)
    w_ref    : (chunk_sub, 128)  signed pre-normalized weights:
                 +1/(S*n_obj_s)  at obj cells, -1/(S*n_noobj_s) at noobj cells,
                 0 at ignored / padded cells
    out_ref  : (1, 2) SMEM       [scale-avg loss_conf_obj, scale-avg loss_conf_noobj]
    acc_*    : (chunk_sub, 128)  VMEM elementwise accumulators (persist over grid)
    """
    c = pl.program_id(0)

    @pl.when(c == 0)
    def _init():
        acc_obj_ref[...] = jnp.zeros_like(acc_obj_ref)
        acc_noobj_ref[...] = jnp.zeros_like(acc_noobj_ref)

    x = conf_ref[...].astype(jnp.float32)
    w = w_ref[...].astype(jnp.float32)

    # Shared stable-softplus piece (single exp + log1p per element on the EUP).
    sp_shared = jnp.log1p(jnp.exp(-jnp.abs(x)))
    bce_obj = sp_shared + jnp.maximum(-x, 0.0)    # BCE(sigmoid(x), 1) = -log(sigmoid(x))
    bce_noobj = sp_shared + jnp.maximum(x, 0.0)   # BCE(sigmoid(x), 0) = -log(1-sigmoid(x))

    w_obj = jnp.maximum(w, 0.0)
    w_noobj = jnp.maximum(-w, 0.0)

    acc_obj_ref[...] += w_obj * bce_obj
    acc_noobj_ref[...] += w_noobj * bce_noobj

    @pl.when(c == pl.num_programs(0) - 1)
    def _fini():
        out_ref[0, 0] = jnp.sum(acc_obj_ref[...])
        out_ref[0, 1] = jnp.sum(acc_noobj_ref[...])


def conf_bce_pallas(conf_tiles, w_tiles, chunk_sub):
    rows = conf_tiles.shape[0]
    assert conf_tiles.shape[1] == 128 and rows % chunk_sub == 0
    nchunks = rows // chunk_sub
    return pl.pallas_call(
        _conf_bce_kernel,
        out_shape=jax.ShapeDtypeStruct((1, 2), jnp.float32),
        grid_spec=pltpu.PrefetchScalarGridSpec(
            num_scalar_prefetch=0,
            grid=(nchunks,),
            in_specs=[
                pl.BlockSpec((chunk_sub, 128), lambda c: (c, 0)),
                pl.BlockSpec((chunk_sub, 128), lambda c: (c, 0)),
            ],
            out_specs=pl.BlockSpec(memory_space=pltpu.MemorySpace.SMEM),
            scratch_shapes=[
                pltpu.VMEM((chunk_sub, 128), jnp.float32),
                pltpu.VMEM((chunk_sub, 128), jnp.float32),
            ],
        ),
        compiler_params=pltpu.CompilerParams(
            dimension_semantics=("arbitrary",)),
    )(conf_tiles, w_tiles)


# --------------------------------------------------------------------------- #
# Host glue: build_targets (faithful to the PyTorch reference, incl. the
# all-or-nothing bound checks and the per-target noobj ignore loop)
# --------------------------------------------------------------------------- #
def build_targets_np(targets, scaled_anchors, nB, nA, nC, nG, ignore_thres):
    targets = np.asarray(targets, np.float32)
    anchors = np.asarray(scaled_anchors, np.float32)

    obj_mask = np.zeros((nB, nA, nG, nG), np.uint8)
    noobj_mask = np.ones((nB, nA, nG, nG), np.uint8)
    tx = np.zeros((nB, nA, nG, nG), np.float32)
    ty = np.zeros((nB, nA, nG, nG), np.float32)
    tw = np.zeros((nB, nA, nG, nG), np.float32)
    th = np.zeros((nB, nA, nG, nG), np.float32)
    tcls = np.zeros((nB, nA, nG, nG, nC), np.float32)

    if targets.shape[0] == 0:
        return obj_mask, noobj_mask, tx, ty, tw, th, tcls

    target_boxes = targets[:, 2:6] * nG
    gxy = target_boxes[:, :2]
    gwh = target_boxes[:, 2:]

    ious = []
    for a in anchors:
        w1, h1 = a[0], a[1]
        w2, h2 = gwh[:, 0], gwh[:, 1]
        inter = np.minimum(w1, w2) * np.minimum(h1, h2)
        union = w1 * h1 + 1e-16 + w2 * h2 - inter
        ious.append(inter / union)
    ious = np.stack(ious)                      # (nA, nT)
    best_n = ious.argmax(0)

    b = targets[:, 0].astype(np.int64)
    labels = targets[:, 1].astype(np.int64)
    gx, gy = gxy[:, 0], gxy[:, 1]
    gw, gh = gwh[:, 0], gwh[:, 1]
    gi = gxy[:, 0].astype(np.int64)
    gj = gxy[:, 1].astype(np.int64)

    in_bounds = (b < nB).all() and (best_n < nA).all() and (gj < nG).all() and (gi < nG).all()
    if in_bounds:
        obj_mask[b, best_n, gj, gi] = 1
        noobj_mask[b, best_n, gj, gi] = 0

    for t in range(ious.shape[1]):
        if b[t] >= nB or gj[t] >= nG or gi[t] >= nG:
            continue
        noobj_mask[b[t], ious[:, t] > ignore_thres, gj[t], gi[t]] = 0

    if in_bounds and (labels < nC).all():
        tx[b, best_n, gj, gi] = gx - np.floor(gx)
        ty[b, best_n, gj, gi] = gy - np.floor(gy)
        tw[b, best_n, gj, gi] = np.log(gw / anchors[best_n][:, 0] + 1e-16)
        th[b, best_n, gj, gi] = np.log(gh / anchors[best_n][:, 1] + 1e-16)
        tcls[b, best_n, gj, gi, labels] = 1

    return obj_mask, noobj_mask, tx, ty, tw, th, tcls


# --------------------------------------------------------------------------- #
# MultiScaleRegionLoss.forward equivalent
# --------------------------------------------------------------------------- #
def multi_scale_region_loss(outputs, targets, anchors_per_scale, num_classes,
                            img_dim, chunk_sub=512, conf_dtype=jnp.float32):
    """Returns a device f32 array of shape (7,):
    (loss_tot, loss_coord, loss_size, loss_conf, loss_cls,
     loss_conf_obj, loss_conf_noobj) averaged over scales."""
    targets_np = np.asarray(targets, np.float32)
    S = len(outputs)
    C = int(num_classes)
    PC = 5 + C
    nB = int(outputs[0].shape[0])
    nA = len(anchors_per_scale[0])
    nT = int(targets_np.shape[0])

    # chunk_sub: sublanes per grid step; multiple of 16 covers f32 and bf16 tiling.
    chunk_sub = max(16, (int(chunk_sub) // 16) * 16)

    conf_rows = []        # device (N_s,) conf-logit vectors (no cross-scale padding)
    w_rows = []           # host   (N_s,) signed pre-normalized weights
    sparse_terms = []     # per-scale (loss_x, loss_y, loss_w, loss_h, loss_cls, wh)
    obj_nan = 0.0         # reproduce reference NaN when a scale has no obj cells
    noobj_nan = 0.0

    for si, (out, anchors) in enumerate(zip(outputs, anchors_per_scale)):
        out = jnp.asarray(out, jnp.float32)
        G = int(out.shape[2])
        N = nB * nA * G * G
        stride = img_dim / G
        scaled_anchors = np.array([(aw / stride, ah / stride) for aw, ah in anchors],
                                  np.float32)

        obj_mask, noobj_mask, tx, ty, tw, th, tcls = build_targets_np(
            targets_np, scaled_anchors, nB, nA, C, G, ignore_thres=0.5)

        n_obj = int(obj_mask.sum())
        n_noobj = int(noobj_mask.sum())
        flat_obj = np.flatnonzero(obj_mask.reshape(N))

        # ---- dense conf pass: conf channel only, cell order (b, a, gj, gi) ----
        out5 = out.reshape(nB, nA, PC, G, G)
        conf_rows.append(out5[:, :, 4, :, :].reshape(N))

        w = np.zeros((N,), np.float32)
        if n_noobj > 0:
            w -= noobj_mask.astype(np.float32).reshape(N) / (S * n_noobj)
        else:
            noobj_nan = np.nan
        if n_obj > 0:
            w[flat_obj] = 1.0 / (S * n_obj)
        else:
            obj_nan = np.nan
        w_rows.append(w)

        # ---- sparse obj-cell losses (<= nT unique cells): gather + plain JAX ----
        if n_obj > 0:
            b_i = (flat_obj // (nA * G * G)).astype(np.int32)
            a_i = ((flat_obj // (G * G)) % nA).astype(np.int32)
            gj_i = ((flat_obj // G) % G).astype(np.int32)
            gi_i = (flat_obj % G).astype(np.int32)

            pv = out5[b_i, a_i, :, gj_i, gi_i]            # (n_obj, PC) device gather
            px = jax.nn.sigmoid(pv[:, 0])
            py = jax.nn.sigmoid(pv[:, 1])
            pw = pv[:, 2]
            ph = pv[:, 3]
            cls_logit = pv[:, 5:]

            tx_o = jnp.asarray(tx.reshape(N)[flat_obj])
            ty_o = jnp.asarray(ty.reshape(N)[flat_obj])
            tw_o = jnp.asarray(tw.reshape(N)[flat_obj])
            th_o = jnp.asarray(th.reshape(N)[flat_obj])
            tcls_o = jnp.asarray(tcls.reshape(N, C)[flat_obj])

            loss_x = jnp.mean(jnp.square(px - tx_o))
            loss_y = jnp.mean(jnp.square(py - ty_o))
            loss_w = jnp.mean(jnp.square(pw - tw_o))
            loss_h = jnp.mean(jnp.square(ph - th_o))
            loss_cls = jnp.mean(jnp.maximum(cls_logit, 0.0) - cls_logit * tcls_o
                                + jnp.log1p(jnp.exp(-jnp.abs(cls_logit))))

            # wh_loss: row-major obj cells (truncated to nT) vs annotation-order
            # targets — exactly what the PyTorch reference computes.
            shape = min(n_obj, nT)
            if shape > 0:
                aw = jnp.asarray(scaled_anchors[a_i[:shape], 0])
                ah = jnp.asarray(scaled_anchors[a_i[:shape], 1])
                bw = jnp.exp(pw[:shape]) * aw
                bh = jnp.exp(ph[:shape]) * ah
                bwbh = jnp.stack([bw, bh], axis=1)
                tgt_wh = jnp.asarray(targets_np[:shape, 3:5])
                wh = jnp.mean(jnp.square(jnp.sqrt(jnp.abs(bwbh) + 1e-32)
                                         - jnp.sqrt(jnp.abs(tgt_wh) + 1e-32)))
            else:
                wh = jnp.float32(np.nan)
        else:
            nanv = jnp.float32(np.nan)       # reference: losses over empty selection
            loss_x = loss_y = loss_w = loss_h = loss_cls = wh = nanv

        sparse_terms.append(jnp.stack([loss_x, loss_y, loss_w, loss_h, loss_cls, wh]))

    # ---- assemble lane/sublane-dense slabs for the Pallas kernel ----
    total = int(sum(r.shape[0] for r in conf_rows))
    rows = _round_up(total, 128) // 128
    rows_padded = _round_up(max(rows, 1), chunk_sub)
    padded_total = rows_padded * 128

    conf_all = jnp.concatenate(conf_rows)
    conf_all = jnp.pad(conf_all, (0, padded_total - total))
    conf_tiles = conf_all.reshape(rows_padded, 128).astype(conf_dtype)

    w_all = np.zeros((padded_total,), np.float32)
    w_all[:total] = np.concatenate(w_rows)
    w_tiles = jnp.asarray(w_all.reshape(rows_padded, 128))

    conf_sums = conf_bce_pallas(conf_tiles, w_tiles, chunk_sub)   # (1, 2)
    loss_conf_obj = conf_sums[0, 0] + jnp.float32(obj_nan)
    loss_conf_noobj = conf_sums[0, 1] + jnp.float32(noobj_nan)

    sp_mean = jnp.mean(jnp.stack(sparse_terms), axis=0)           # (6,)
    loss_x_a, loss_y_a, loss_w_a, loss_h_a, loss_cls_a, loss_size_a = (
        sp_mean[0], sp_mean[1], sp_mean[2], sp_mean[3], sp_mean[4], sp_mean[5])

    loss_conf = 1.0 * loss_conf_obj + 100.0 * loss_conf_noobj
    loss_coord = loss_x_a + loss_y_a
    loss_tot = loss_x_a + loss_y_a + loss_w_a + loss_h_a + loss_conf + loss_cls_a

    return jnp.stack([loss_tot, loss_coord, loss_size_a, loss_conf, loss_cls_a,
                      loss_conf_obj, loss_conf_noobj])


# --------------------------------------------------------------------------- #
if __name__ == "__main__":
    key = jax.random.PRNGKey(0)
    nB, C, nA = 2, 4, 3
    img_dim = 256
    grids = (8, 16, 32)
    anchors_per_scale = [
        [(116.0, 90.0), (156.0, 198.0), (200.0, 180.0)],
        [(30.0, 61.0), (62.0, 45.0), (59.0, 119.0)],
        [(10.0, 13.0), (16.0, 30.0), (33.0, 23.0)],
    ]

    keys = jax.random.split(key, len(grids) + 3)
    outputs = [
        0.5 * jax.random.normal(keys[i], (nB, nA * (C + 5), g, g), jnp.float32)
        for i, g in enumerate(grids)
    ]

    nT = 6
    kb, kl, kbox = keys[len(grids):]
    t_batch = jax.random.randint(kb, (nT, 1), 0, nB).astype(jnp.float32)
    t_label = jax.random.randint(kl, (nT, 1), 0, C).astype(jnp.float32)
    t_xywh = jax.random.uniform(kbox, (nT, 4), minval=0.1, maxval=0.8)
    targets = np.asarray(jnp.concatenate([t_batch, t_label, t_xywh], axis=1))

    # chunk_sub=16 -> 4 grid steps on the toy shapes, exercising the tiled
    # accumulate-over-chunks path (default 512 for real YOLO sizes).
    result = multi_scale_region_loss(outputs, targets, anchors_per_scale, C,
                                     img_dim, chunk_sub=16)
    result = jax.block_until_ready(result)     # single host<->device sync
    vals = [float(v) for v in np.asarray(result)]
    assert len(vals) == 7
    assert all(np.isfinite(v) for v in vals)
    print("KERNEL_OK")
</pallas_src>

<mosaic_0001>
module attributes {stable_mosaic.version = 11 : i64} {
  func.func @_conf_bce_kernel(%arg0: i32, %arg1: memref<16x128xf32, #tpu.memory_space<vmem>>, %arg2: memref<16x128xf32, #tpu.memory_space<vmem>>, %arg3: memref<1x2xf32, #tpu.memory_space<smem>>, %arg4: memref<16x128xf32, #tpu.memory_space<vmem>>, %arg5: memref<16x128xf32, #tpu.memory_space<vmem>>) attributes {dimension_semantics = [#tpu.dimension_semantics<arbitrary>], iteration_bounds = array<i64: 4>, scalar_prefetch = 0 : i64, scratch_operands = 2 : i64, tpu.core_type = #tpu.core_type<tc>, window_params = [{transform_indices = @transform_0, window_bounds = array<i64: 16, 128>}, {transform_indices = @transform_1, window_bounds = array<i64: 16, 128>}, {transform_indices = @transform_2, window_bounds = array<i64: 1, 2>}]} {
    %c0_i32 = arith.constant 0 : i32
    %0 = arith.cmpi eq, %arg0, %c0_i32 : i32
    %1 = arith.extui %0 : i1 to i32
    %c0_i32_0 = arith.constant 0 : i32
    %2 = arith.cmpi ne, %1, %c0_i32_0 : i32
    scf.if %2 {
      %cst_19 = arith.constant 0.000000e+00 : f32
      %35 = vector.broadcast %cst_19 : f32 to vector<16x128xf32>
      %c0_20 = arith.constant 0 : index
      %c0_21 = arith.constant 0 : index
      %36 = vector.load %arg4[%c0_20, %c0_21] : memref<16x128xf32, #tpu.memory_space<vmem>>, vector<16x128xf32>
      tpu.vector_store %arg4[%c0_20, %c0_21], %35 {strides = array<i32>} : memref<16x128xf32, #tpu.memory_space<vmem>>, vector<16x128xf32>,
      %cst_22 = arith.constant 0.000000e+00 : f32
      %37 = vector.broadcast %cst_22 : f32 to vector<16x128xf32>
      %c0_23 = arith.constant 0 : index
      %c0_24 = arith.constant 0 : index
      %38 = vector.load %arg5[%c0_23, %c0_24] : memref<16x128xf32, #tpu.memory_space<vmem>>, vector<16x128xf32>
      tpu.vector_store %arg5[%c0_23, %c0_24], %37 {strides = array<i32>} : memref<16x128xf32, #tpu.memory_space<vmem>>, vector<16x128xf32>,
    } else {
    }
    %c0 = arith.constant 0 : index
    %c0_1 = arith.constant 0 : index
    %3 = vector.load %arg1[%c0, %c0_1] : memref<16x128xf32, #tpu.memory_space<vmem>>, vector<16x128xf32>
    %c0_2 = arith.constant 0 : index
    %c0_3 = arith.constant 0 : index
    %4 = vector.load %arg2[%c0_2, %c0_3] : memref<16x128xf32, #tpu.memory_space<vmem>>, vector<16x128xf32>
    %5 = math.absf %3 : vector<16x128xf32>
    %cst = arith.constant 0.000000e+00 : f32
    %6 = vector.broadcast %cst : f32 to vector<16x128xf32>
    %7 = arith.subf %6, %5 : vector<16x128xf32>
    %8 = math.exp %7 : vector<16x128xf32>
    %9 = math.log1p %8 : vector<16x128xf32>
    %cst_4 = arith.constant 0.000000e+00 : f32
    %10 = vector.broadcast %cst_4 : f32 to vector<16x128xf32>
    %11 = arith.subf %10, %3 : vector<16x128xf32>
    %cst_5 = arith.constant 0.000000e+00 : f32
    %12 = vector.broadcast %cst_5 : f32 to vector<16x128xf32>
    %13 = arith.maximumf %11, %12 : vector<16x128xf32>
    %14 = arith.addf %9, %13 : vector<16x128xf32>
    %cst_6 = arith.constant 0.000000e+00 : f32
    %15 = vector.broadcast %cst_6 : f32 to vector<16x128xf32>
    %16 = arith.maximumf %3, %15 : vector<16x128xf32>
    %17 = arith.addf %9, %16 : vector<16x128xf32>
    %cst_7 = arith.constant 0.000000e+00 : f32
    %18 = vector.broadcast %cst_7 : f32 to vector<16x128xf32>
    %19 = arith.maximumf %4, %18 : vector<16x128xf32>
    %cst_8 = arith.constant 0.000000e+00 : f32
    %20 = vector.broadcast %cst_8 : f32 to vector<16x128xf32>
    %21 = arith.subf %20, %4 : vector<16x128xf32>
    %cst_9 = arith.constant 0.000000e+00 : f32
    %22 = vector.broadcast %cst_9 : f32 to vector<16x128xf32>
    %23 = arith.maximumf %21, %22 : vector<16x128xf32>
    %c0_10 = arith.constant 0 : index
    %c0_11 = arith.constant 0 : index
    %24 = vector.load %arg4[%c0_10, %c0_11] : memref<16x128xf32, #tpu.memory_space<vmem>>, vector<16x128xf32>
    %25 = arith.mulf %19, %14 : vector<16x128xf32>
    %26 = arith.addf %24, %25 : vector<16x128xf32>
    %c0_12 = arith.constant 0 : index
    %c0_13 = arith.constant 0 : index
    %27 = vector.load %arg4[%c0_12, %c0_13] : memref<16x128xf32, #tpu.memory_space<vmem>>, vector<16x128xf32>
    tpu.vector_store %arg4[%c0_12, %c0_13], %26 {strides = array<i32>} : memref<16x128xf32, #tpu.memory_space<vmem>>, vector<16x128xf32>,
    %c0_14 = arith.constant 0 : index
    %c0_15 = arith.constant 0 : index
    %28 = vector.load %arg5[%c0_14, %c0_15] : memref<16x128xf32, #tpu.memory_space<vmem>>, vector<16x128xf32>
    %29 = arith.mulf %23, %17 : vector<16x128xf32>
    %30 = arith.addf %28, %29 : vector<16x128xf32>
    %c0_16 = arith.constant 0 : index
    %c0_17 = arith.constant 0 : index
    %31 = vector.load %arg5[%c0_16, %c0_17] : memref<16x128xf32, #tpu.memory_space<vmem>>, vector<16x128xf32>
    tpu.vector_store %arg5[%c0_16, %c0_17], %30 {strides = array<i32>} : memref<16x128xf32, #tpu.memory_space<vmem>>, vector<16x128xf32>,
    %c3_i32 = arith.constant 3 : i32
    %32 = arith.cmpi eq, %arg0, %c3_i32 : i32
    %33 = arith.extui %32 : i1 to i32
    %c0_i32_18 = arith.constant 0 : i32
    %34 = arith.cmpi ne, %33, %c0_i32_18 : i32
    scf.if %34 {
      %c0_19 = arith.constant 0 : index
      %c0_20 = arith.constant 0 : index
      %35 = vector.load %arg4[%c0_19, %c0_20] : memref<16x128xf32, #tpu.memory_space<vmem>>, vector<16x128xf32>
      %36 = vector.shape_cast %35 : vector<16x128xf32> to vector<1x16x128xf32>
      %cst_21 = arith.constant dense<0.000000e+00> : vector<1xf32>
      %37 = vector.multi_reduction <add>, %36, %cst_21 [1, 2] : vector<1x16x128xf32> to vector<1xf32>
      %38 = vector.shape_cast %37 : vector<1xf32> to vector<1x1x1xf32>
      %39 = vector.extract %38[0, 0, 0] : f32 from vector<1x1x1xf32>
      %c0_22 = arith.constant 0 : index
      %c0_23 = arith.constant 0 : index
      %40 = memref.load %arg3[%c0_22, %c0_23] : memref<1x2xf32, #tpu.memory_space<smem>>
      memref.store %39, %arg3[%c0_22, %c0_23] : memref<1x2xf32, #tpu.memory_space<smem>>
      %c0_24 = arith.constant 0 : index
      %c0_25 = arith.constant 0 : index
      %41 = vector.load %arg5[%c0_24, %c0_25] : memref<16x128xf32, #tpu.memory_space<vmem>>, vector<16x128xf32>
      %42 = vector.shape_cast %41 : vector<16x128xf32> to vector<1x16x128xf32>
      %cst_26 = arith.constant dense<0.000000e+00> : vector<1xf32>
      %43 = vector.multi_reduction <add>, %42, %cst_26 [1, 2] : vector<1x16x128xf32> to vector<1xf32>
      %44 = vector.shape_cast %43 : vector<1xf32> to vector<1x1x1xf32>
      %45 = vector.extract %44[0, 0, 0] : f32 from vector<1x1x1xf32>
      %c0_27 = arith.constant 0 : index
      %c1 = arith.constant 1 : index
      %46 = memref.load %arg3[%c0_27, %c1] : memref<1x2xf32, #tpu.memory_space<smem>>
      memref.store %45, %arg3[%c0_27, %c1] : memref<1x2xf32, #tpu.memory_space<smem>>
    } else {
    }
    return
  }
  func.func @transform_0(%arg0: i32) -> (i32, i32) {
    %c0_i32 = arith.constant 0 : i32
    %c0_i32_0 = arith.constant 0 : i32
    return %arg0, %c0_i32 : i32, i32
  }
  func.func @transform_1(%arg0: i32) -> (i32, i32) {
    %c0_i32 = arith.constant 0 : i32
    %c0_i32_0 = arith.constant 0 : i32
    return %arg0, %c0_i32 : i32, i32
  }
  func.func @transform_2(%arg0: i32) -> (i32, i32) {
    %c0_i32 = arith.constant 0 : i32
    %c0_i32_0 = arith.constant 0 : i32
    %c0_i32_1 = arith.constant 0 : i32
    return %c0_i32, %c0_i32_0 : i32, i32
  }
}

</mosaic_0001>

<llo_original>
// kernel: tpu_custom_call.1
$region0: #{tpu_custom_call.1}
  #allocation0 [shape = 'u32[]', space=smem, size = 0x4, offset = 0x4, fixed_abs, tag = 'smem constant byte address 0x4 - core index']
  #allocation1 [shape = 'u32[144,128]{1,0:T(1,128)}', space=vmem, size = 0x12000, scoped, tag = 'internal scratch']
  #allocation2 [shape = 'f32[16,128]{1,0:T(8,128)}', space=vmem, size = 0x2000, scoped, tag = 'scratch operand']
  #allocation3 [shape = 'f32[16,128]{1,0:T(8,128)}', space=vmem, size = 0x2000, scoped, tag = 'scratch operand']
  %s0 = inlined_call_operand.hbm [shape: f32[64,128], index: 0, kind: input, shape index: {}]
  %s1 = inlined_call_operand.hbm [shape: f32[64,128], index: 1, kind: input, shape index: {}]
  %s2 = inlined_call_operand.hbm [shape: f32[1,2], index: 2, kind: output, shape index: {}]
  %s3 = sld [smem:[#allocation0]]
  $region57: #{tpu_custom_call.1} parent=0
    _
  %s5 = ssub.s32 1, %s3
  %s6 = scalar_select 0, %s5, %s3
  $region1: #{tpu_custom_call.1} parent=0
    #allocation4 [shape = 'u8[16384]{0}', space=vmem, size = 0x4000, scoped, tag = 'input window, operand 0']
    #allocation5 [shape = 's32[2]{0}', space=sflag, size = 0x8, scoped, tag = 'scoped memory for tpu_custom_call.1']
    #allocation6 [shape = 's32[2]{0}', space=sflag, size = 0x8, scoped, tag = 'scoped memory for tpu_custom_call.1']
    #allocation7 [shape = 'u8[16384]{0}', space=vmem, size = 0x4000, scoped, tag = 'input window, operand 1']
    #allocation8 [shape = 's32[2]{0}', space=sflag, size = 0x8, scoped, tag = 'scoped memory for tpu_custom_call.1']
    #allocation9 [shape = 'u8[512]{0}', space=smem, size = 0x200, scoped, tag = 'output window, operand 0, single buffered']
    %7 = vsyncpa [#allocation5], 0
    %s8 = scalar_lea.sflag [#allocation5], 1
    %9 = vsyncpa %s8, 0
    %10 = vsyncpa [#allocation8], 0
    %s11 = scalar_lea.sflag [#allocation8], 1
    %12 = vsyncpa %s11, 0
    %13 = vsyncpa [#allocation6], 0
    loop: start=0, step=1, limit=6
    $region2: #{tpu_custom_call.1} parent=1 // loop_pre_header
      _
    $region3: #{tpu_custom_call.1} parent=1 // loop_header
      %s15 = sphi 0, %s19
      %p16 = scmp.ge.s32.totalorder %s15, 6
      %s25 = sphi 0, %s27
      %s28 = sphi 0, %s25
      %s29 = sphi 0, %s28
      %s45 = sphi 0, %s29
      %s51 = sphi 0, %s53
      %s54 = sphi 0, %s51
      %s55 = sphi 0, %s54
      %s71 = sphi 0, %s55
      %s75 = sphi 0, %s75
      %s77 = sphi 0, %s75
      %s78 = sphi 0, %s77
      %s92 = sphi 0, %s78
    $region4: #{tpu_custom_call.1} parent=1 // loop_header_branch
      %18 = sbr.rel (%p16) target = $region8
    $region5: #{tpu_custom_call.1} parent=1 // loop_body
      %s20 = ssub.s32 %s15, 1
      %s21 = ssub.s32 %s15, 2
      %s22 = sadd.s32 %s15, 1
      %s23 = ssub.s32 %s15, %s22
      %p24 = scmp.eq.s32.totalorder %s23, 0
      %s26 = sadd.s32 %s25, 1
      %s27 = scalar_select %p24, %s25, %s26
      %p30 = pneg %p24
      %p31 = scmp.eq.s32.totalorder %s15, 3
      %p32 = por %p30, %p31
      %p33 = scmp.ne.s32.totalorder %s25, %s28
      %p34 = scmp.eq.s32.totalorder %s15, 0
      %p35 = por %p33, %p34
      %p36 = scmp.ne.s32.totalorder %s25, %s28
      %p37 = scmp.eq.s32.totalorder %s20, 3
      %p38 = por %p36, %p37
      %p39 = scmp.ne.s32.totalorder %s28, %s29
      %p40 = scmp.eq.s32.totalorder %s20, 0
      %p41 = por %p39, %p40
      %p42 = scmp.ne.s32.totalorder %s28, %s29
      %p43 = scmp.eq.s32.totalorder %s21, 3
      %p44 = por %p42, %p43
      %p46 = scmp.ne.s32.totalorder %s29, %s45
      %p47 = scmp.eq.s32.totalorder %s21, 0
      %p48 = por %p46, %p47
      %s49 = ssub.s32 %s15, %s22
      %p50 = scmp.eq.s32.totalorder %s49, 0
      %s52 = sadd.s32 %s51, 1
      %s53 = scalar_select %p50, %s51, %s52
      %p56 = pneg %p50
      %p57 = scmp.eq.s32.totalorder %s15, 3
      %p58 = por %p56, %p57
      %p59 = scmp.ne.s32.totalorder %s51, %s54
      %p60 = scmp.eq.s32.totalorder %s15, 0
      %p61 = por %p59, %p60
      %p62 = scmp.ne.s32.totalorder %s51, %s54
      %p63 = scmp.eq.s32.totalorder %s20, 3
      %p64 = por %p62, %p63
      %p65 = scmp.ne.s32.totalorder %s54, %s55
      %p66 = scmp.eq.s32.totalorder %s20, 0
      %p67 = por %p65, %p66
      %p68 = scmp.ne.s32.totalorder %s54, %s55
      %p69 = scmp.eq.s32.totalorder %s21, 3
      %p70 = por %p68, %p69
      %p72 = scmp.ne.s32.totalorder %s55, %s71
      %p73 = scmp.eq.s32.totalorder %s21, 0
      %p74 = por %p72, %p73
      %s76 = sadd.s32 %s75, 1
      %p79 = scmp.eq.s32.totalorder %s15, 3
      %p80 = scmp.ne.s32.totalorder %s75, %s77
      %p81 = scmp.eq.s32.totalorder %s15, 0
      %p82 = por %p80, %p81
      %p83 = scmp.ne.s32.totalorder %s75, %s77
      %p84 = scmp.eq.s32.totalorder %s20, 3
      %p85 = por %p83, %p84
      %p86 = scmp.ne.s32.totalorder %s77, %s78
      %p87 = scmp.eq.s32.totalorder %s20, 0
      %p88 = por %p86, %p87
      %p89 = scmp.ne.s32.totalorder %s77, %s78
      %p90 = scmp.eq.s32.totalorder %s21, 3
      %p91 = por %p89, %p90
      %p93 = scmp.ne.s32.totalorder %s78, %s92
      %p94 = scmp.eq.s32.totalorder %s21, 0
      %p95 = por %p93, %p94
      %p96 = scmp.le.s32.totalorder 1, %s15
      %p97 = scmp.lt.s32.totalorder %s15, 5
      %p98 = pnand %p96, %p97
      %p99 = pneg %p98
      // Predicated region
      $region9: #{tpu_custom_call.1} parent=5 // pred_check
        _
      $region10: #{tpu_custom_call.1} parent=5 // pred_check_branch
        %101 = sbr.rel (%p98) target = $region12
      $region11: #{tpu_custom_call.1} parent=5 // pred_region
        %s102 = ssub.s32 %s15, 1
      $region12: #{tpu_custom_call.1} parent=5 // pred_fallthru
        _
      %p103 = scmp.lt.s32.totalorder %s15, 4
      // Predicated region
      $region13: #{tpu_custom_call.1} parent=5 // pred_check
        %p104 = pneg %p103
      $region14: #{tpu_custom_call.1} parent=5 // pred_check_branch
        %106 = sbr.rel (%p104) target = $region16
      $region15: #{tpu_custom_call.1} parent=5 // pred_region
        // Predicated region
        $region17: #{tpu_custom_call.1} parent=15 // pred_check
          %p107 = pneg %p35
        $region18: #{tpu_custom_call.1} parent=15 // pred_check_branch
          %109 = sbr.rel (%p107) target = $region20
        $region19: #{tpu_custom_call.1} parent=15 // pred_region
          %s110 = sand.u32 %s25, 1
          %s111 = scalar_lea.sflag [#allocation5], %s110
          %s112 = sand.u32 %s25, 1
          %s113 = smul.addr %s112, 16
          %s114 = scalar_lea.vmem [#allocation4], %s113
          %s115 = smul.u32 2, %s15
          %s117 = ssub.s32 256, 256
          %118 = vsyncadd %s111, %s117
          %s119 = smul.addr %s115, 128
          %s120 = scalar_lea.hbm %s0, %s119
          %s121 = sshll.u32 %s114, 4
          %s122 = int_to_ptr.vmem [resolvable:$true] %s121
          %127 = dma.hbm_to_vmem [thread:$0]  %s120, 256, %s122, %s111, 128, 128, 8
        $region20: #{tpu_custom_call.1} parent=15 // pred_fallthru
          _
        // Predicated region
        $region21: #{tpu_custom_call.1} parent=15 // pred_check
          %p128 = pneg %p61
        $region22: #{tpu_custom_call.1} parent=15 // pred_check_branch
          %130 = sbr.rel (%p128) target = $region24
        $region23: #{tpu_custom_call.1} parent=15 // pred_region
          %s131 = sand.u32 %s51, 1
          %s132 = scalar_lea.sflag [#allocation8], %s131
          %s133 = sand.u32 %s51, 1
          %s134 = smul.addr %s133, 16
          %s135 = scalar_lea.vmem [#allocation7], %s134
          %s136 = smul.u32 2, %s15
          %s138 = ssub.s32 256, 256
          %139 = vsyncadd %s132, %s138
          %s140 = smul.addr %s136, 128
          %s141 = scalar_lea.hbm %s1, %s140
          %s142 = sshll.u32 %s135, 4
          %s143 = int_to_ptr.vmem [resolvable:$true] %s142
          %148 = dma.hbm_to_vmem [thread:$0]  %s141, 256, %s143, %s132, 128, 128, 8
        $region24: #{tpu_custom_call.1} parent=15 // pred_fallthru
          _
      $region16: #{tpu_custom_call.1} parent=5 // pred_fallthru
        _
      %p149 = scmp.le.s32.totalorder 1, %s15
      %p150 = scmp.lt.s32.totalorder %s15, 5
      %p151 = pnand %p149, %p150
      %p152 = pneg %p151
      // Predicated region
      $region25: #{tpu_custom_call.1} parent=5 // pred_check
        _
      $region26: #{tpu_custom_call.1} parent=5 // pred_check_branch
        %154 = sbr.rel (%p151) target = $region28
      $region27: #{tpu_custom_call.1} parent=5 // pred_region
        %s155 = ssub.s32 %s15, 1
        %s156 = sand.u32 %s28, 1
        %s157 = scalar_lea.sflag [#allocation5], %s156
        %s158 = sand.u32 %s28, 1
        %s159 = smul.addr %s158, 16
        %s160 = scalar_lea.vmem [#allocation4], %s159
        // Predicated region
        $region29: #{tpu_custom_call.1} parent=27 // pred_check
          %p161 = pneg %p41
        $region30: #{tpu_custom_call.1} parent=27 // pred_check_branch
          %163 = sbr.rel (%p161) target = $region32
        $region31: #{tpu_custom_call.1} parent=27 // pred_region
          %164 = dma.done %s157, 256
        $region32: #{tpu_custom_call.1} parent=27 // pred_fallthru
          _
        %s165 = sand.u32 %s54, 1
        %s166 = scalar_lea.sflag [#allocation8], %s165
        %s167 = sand.u32 %s54, 1
        %s168 = smul.addr %s167, 16
        %s169 = scalar_lea.vmem [#allocation7], %s168
        // Predicated region
        $region33: #{tpu_custom_call.1} parent=27 // pred_check
          %p170 = pneg %p67
        $region34: #{tpu_custom_call.1} parent=27 // pred_check_branch
          %172 = sbr.rel (%p170) target = $region36
        $region35: #{tpu_custom_call.1} parent=27 // pred_region
          %173 = dma.done %s166, 256
        $region36: #{tpu_custom_call.1} parent=27 // pred_fallthru
          _
        %s174 = sand.u32 %s28, 1
        %s175 = scalar_lea.sflag [#allocation5], %s174
        %s176 = sand.u32 %s28, 1
        %s177 = smul.addr %s176, 16
        %s178 = scalar_lea.vmem [#allocation4], %s177
        %p179 = pneg %p41
        %p180 = pneg %p38
        %s181 = sand.u32 %s54, 1
        %s182 = scalar_lea.sflag [#allocation8], %s181
        %s183 = sand.u32 %s54, 1
        %s184 = smul.addr %s183, 16
        %s185 = scalar_lea.vmem [#allocation7], %s184
        %p186 = pneg %p67
        %p187 = pneg %p64
        %p188 = pneg %p88
        %p189 = pneg %p85
        %s190 = smul.u32 2, %s20
        %s191 = smul.u32 2, %s20
        %p192 = scmp.eq.s32.totalorder %s20, 0
        // Predicated region
        $region37: #{tpu_custom_call.1} parent=27 // pred_check
          %p193 = pneg %p192
        $region38: #{tpu_custom_call.1} parent=27 // pred_check_branch
          %195 = sbr.rel (%p193) target = $region40
        $region39: #{tpu_custom_call.1} parent=27 // pred_region
          %196 = vst [vmem:[#allocation2] sm:$0xff] 0.0
          %197 = vst [vmem:[#allocation2 + $0x8] sm:$0xff] 0.0
          %198 = vst [vmem:[#allocation3] sm:$0xff] 0.0
          %199 = vst [vmem:[#allocation3 + $0x8] sm:$0xff] 0.0
        $region40: #{tpu_custom_call.1} parent=27 // pred_fallthru
          _
        %v200 = vld [vmem:[%s160] sm:$0xff]
        %v201 = vld [vmem:[%s160 + $0x8] sm:$0xff]
        %v202 = vld [vmem:[%s169] sm:$0xff]
        %v203 = vld [vmem:[%s169 + $0x8] sm:$0xff]
        %v204 = vand.u32 2147483647, %v200
        %v205 = vand.u32 2147483647, %v201
        %v206 = vsub.f32 0.0, %v204
        %v207 = vsub.f32 0.0, %v205
        %v208 = vmul.f32 %v206, 1.442695
        %v209 = vpow.pop %v208
        %v210 = vmul.f32 %v207, 1.442695
        %v211 = vpow.pop %v210
        %v212 = vadd.f32 %v209, 1.0
        %v213 = vlog2.pop %v212
        %v214 = vmul.f32 %v213, 0.6931472
        %v215 = vmul.f32 -0.5, %v209
        %v216 = vadd.f32 %v215, 1.0
        %v217 = vmul.f32 %v216, %v209
        %v218 = vand.u32 2147483647, %v209
        %vm219 = vcmp.lt.f32.partialorder %v218, 0.0004427343
        %v220 = vsel %vm219, %v217, %v214
        %v221 = vadd.f32 %v211, 1.0
        %v222 = vlog2.pop %v221
        %v223 = vmul.f32 %v222, 0.6931472
        %v224 = vmul.f32 -0.5, %v211
        %v225 = vadd.f32 %v224, 1.0
        %v226 = vmul.f32 %v225, %v211
        %v227 = vand.u32 2147483647, %v211
        %vm228 = vcmp.lt.f32.partialorder %v227, 0.0004427343
        %v229 = vsel %vm228, %v226, %v223
        %v230 = vsub.f32 0.0, %v200
        %v231 = vsub.f32 0.0, %v201
        %v232 = vmax.f32 %v230, 0.0
        %v233 = vmax.f32 %v231, 0.0
        %v234 = vadd.f32 %v220, %v232
        %v235 = vadd.f32 %v229, %v233
        %v236 = vmax.f32 %v200, 0.0
        %v237 = vmax.f32 %v201, 0.0
        %v238 = vadd.f32 %v220, %v236
        %v239 = vadd.f32 %v229, %v237
        %v240 = vmax.f32 %v202, 0.0
        %v241 = vmax.f32 %v203, 0.0
        %v242 = vsub.f32 0.0, %v202
        %v243 = vsub.f32 0.0, %v203
        %v244 = vmax.f32 %v242, 0.0
        %v245 = vmax.f32 %v243, 0.0
        %v246 = vld [vmem:[#allocation2] sm:$0xff]
        %v247 = vld [vmem:[#allocation2 + $0x8] sm:$0xff]
        %v248 = vmul.f32 %v240, %v234
        %v249 = vmul.f32 %v241, %v235
        %v250 = vadd.f32 %v246, %v248
        %v251 = vadd.f32 %v247, %v249
        %252 = vst [vmem:[#allocation2] sm:$0xff] %v250
        %253 = vst [vmem:[#allocation2 + $0x8] sm:$0xff] %v251
        %v254 = vld [vmem:[#allocation3] sm:$0xff]
        %v255 = vld [vmem:[#allocation3 + $0x8] sm:$0xff]
        %v256 = vmul.f32 %v244, %v238
        %v257 = vmul.f32 %v245, %v239
        %v258 = vadd.f32 %v254, %v256
        %v259 = vadd.f32 %v255, %v257
        %260 = vst [vmem:[#allocation3] sm:$0xff] %v258
        %261 = vst [vmem:[#allocation3 + $0x8] sm:$0xff] %v259
        %p262 = scmp.eq.s32.totalorder %s20, 3
        // Predicated region
        $region41: #{tpu_custom_call.1} parent=27 // pred_check
          %p263 = pneg %p262
        $region42: #{tpu_custom_call.1} parent=27 // pred_check_branch
          %265 = sbr.rel (%p263) target = $region44
        $region43: #{tpu_custom_call.1} parent=27 // pred_region
          %v266 = vld [vmem:[#allocation2] sm:$0xff]
          %v267 = vld [vmem:[#allocation2 + $0x8] sm:$0xff]
          %v268 = vadd.f32 %v266, %v267
          %269 = vadd.xlane.f32.xlu0 %v268
          %v270 = vpop.xlane.xlu0 %269
          %v271 = vrot.slane %v270, 4
          %v272 = vadd.f32 %v270, %v271
          %v273 = vrot.slane %v272, 2
          %v274 = vadd.f32 %v272, %v273
          %v275 = vrot.slane %v274, 1
          %v276 = vadd.f32 %v274, %v275
          %s277 = vtos %v276
          %s278 = scalar_lea.smem [#allocation9], 0
          %279 = sst [smem:[%s278]] %s277
          %v280 = vld [vmem:[#allocation3] sm:$0xff]
          %v281 = vld [vmem:[#allocation3 + $0x8] sm:$0xff]
          %v282 = vadd.f32 %v280, %v281
          %283 = vadd.xlane.f32.xlu0 %v282
          %v284 = vpop.xlane.xlu0 %283
          %v285 = vrot.slane %v284, 4
          %v286 = vadd.f32 %v284, %v285
          %v287 = vrot.slane %v286, 2
          %v288 = vadd.f32 %v286, %v287
          %v289 = vrot.slane %v288, 1
          %v290 = vadd.f32 %v288, %v289
          %s291 = vtos %v290
          %s292 = scalar_lea.smem [#allocation9], 1
          %293 = sst [smem:[%s292]] %s291
        $region44: #{tpu_custom_call.1} parent=27 // pred_fallthru
          _
        // Predicated region
        $region45: #{tpu_custom_call.1} parent=27 // pred_check
          %p294 = pneg %p85
        $region46: #{tpu_custom_call.1} parent=27 // pred_check_branch
          %296 = sbr.rel (%p294) target = $region48
        $region47: #{tpu_custom_call.1} parent=27 // pred_region
          %s298 = ssub.s32 16, 16
          %299 = vsyncadd [#allocation6], %s298
          %302 = dma.smem_to_hbm [#allocation9], 16, %s2, [#allocation6]
        $region48: #{tpu_custom_call.1} parent=27 // pred_fallthru
          _
        // Predicated region
        $region49: #{tpu_custom_call.1} parent=27 // pred_check
          %p303 = pneg %p85
        $region50: #{tpu_custom_call.1} parent=27 // pred_check_branch
          %305 = sbr.rel (%p303) target = $region52
        $region51: #{tpu_custom_call.1} parent=27 // pred_region
          %306 = dma.done [#allocation6], 16
        $region52: #{tpu_custom_call.1} parent=27 // pred_fallthru
          _
        %307 = sfence
      $region28: #{tpu_custom_call.1} parent=5 // pred_fallthru
        _
      %p308 = scmp.le.s32.totalorder 2, %s15
      // Predicated region
      $region53: #{tpu_custom_call.1} parent=5 // pred_check
        %p309 = pneg %p308
      $region54: #{tpu_custom_call.1} parent=5 // pred_check_branch
        %311 = sbr.rel (%p309) target = $region56
      $region55: #{tpu_custom_call.1} parent=5 // pred_region
        %s312 = ssub.s32 %s15, 2
      $region56: #{tpu_custom_call.1} parent=5 // pred_fallthru
        _
    $region6: #{tpu_custom_call.1} parent=1 // loop_footer
      %s19 = sadd.s32 1, %s15
    $region7: #{tpu_custom_call.1} parent=1 // loop_footer_branch
      %14 = sbr.rel target = $region3
    $region8: #{tpu_custom_call.1} parent=1 // loop_exit
      _
    %313 = vsyncpa [#allocation5], 1
    %s314 = scalar_lea.sflag [#allocation5], 1
    %315 = vsyncpa %s314, 1
    %316 = vsyncpa [#allocation8], 1
    %s317 = scalar_lea.sflag [#allocation8], 1
    %318 = vsyncpa %s317, 1
    %319 = vsyncpa [#allocation6], 1
    %s320 = scalar_lea.sflag [#allocation6], 1
    %321 = vsyncpa %s320, 1

</llo_original>
